<compile_context>
chip_gen: v6e
topology: v6e:2x2x1
jax: 0.10.0
libtpu: 0.0.40
codegen_flags: <defaults>
</compile_context>

<pallas_src>
import jax
import jax.numpy as jnp
from jax.experimental import pallas as pl
from jax.experimental.pallas import tpu as pltpu


_LANE = 128  # TPU lane width: pad feature dims to this for lane-dense I/O.


def _fused_gcn_kernel(a_ref, h_ref, w1_ref, b1_ref, w2_ref, b2_ref,
                      o_ref, hid_ref):
    """Fused 2-layer GCN: hidden activation stays in VMEM scratch.

    a_ref:  [N, N]      bf16   normalized adjacency A_hat
    h_ref:  [N, 128]    bf16   input features (zero-padded lanes)
    w*_ref: [128, 128]  bf16   zero-padded weights
    b*_ref: [1, 128]    f32    zero-padded biases
    o_ref:  [N, 128]    f32    padded output (sliced in wrapper)
    hid_ref:[N, 128]    f32    VMEM scratch for the hidden activation
    """
    # ---- Layer 1: hidden = ReLU(A_hat @ (h @ W1) + b1) ----
    xw1 = jnp.dot(h_ref[...], w1_ref[...], preferred_element_type=jnp.float32)
    agg1 = jnp.dot(a_ref[...], xw1.astype(jnp.bfloat16),
                   preferred_element_type=jnp.float32)
    hid_ref[...] = jnp.maximum(agg1 + b1_ref[...], 0.0)

    # Dropout(p=0.5) in eval mode is the identity.
    # TODO(synk): training-mode dropout would need pltpu.prng_seed /
    # pltpu.prng_random_bits inside this fused kernel.

    # ---- Layer 2: out = A_hat @ (hidden @ W2) + b2 ----
    xw2 = jnp.dot(hid_ref[...].astype(jnp.bfloat16), w2_ref[...],
                  preferred_element_type=jnp.float32)
    agg2 = jnp.dot(a_ref[...], xw2.astype(jnp.bfloat16),
                   preferred_element_type=jnp.float32)
    o_ref[...] = (agg2 + b2_ref[...]).astype(o_ref.dtype)


def _pad2d(x, rows, cols):
    return jnp.pad(x, ((0, rows - x.shape[0]), (0, cols - x.shape[1])))


@jax.jit
def model_forward(a_hat, h, params):
    """Mirrors Model.forward for the 2-layer GCN stack (eval mode)."""
    n = h.shape[0]
    f_out = params["w2"].shape[1]

    # Lane-dense padding (zeros) + bf16 cast of the MXU operands.
    a_bf = a_hat.astype(jnp.bfloat16)
    h_p = _pad2d(h, n, _LANE).astype(jnp.bfloat16)
    w1_p = _pad2d(params["w1"], _LANE, _LANE).astype(jnp.bfloat16)
    w2_p = _pad2d(params["w2"], _LANE, _LANE).astype(jnp.bfloat16)
    b1_p = _pad2d(params["b1"], 1, _LANE).astype(jnp.float32)
    b2_p = _pad2d(params["b2"], 1, _LANE).astype(jnp.float32)

    flops = 2 * (2 * n * _LANE * _LANE + 2 * n * n * _LANE)
    bytes_accessed = (a_bf.size * 2 + h_p.size * 2 + w1_p.size * 2
                      + w2_p.size * 2 + b1_p.size * 4 + b2_p.size * 4
                      + n * _LANE * 4)

    vmem_spec = pl.BlockSpec(memory_space=pltpu.MemorySpace.VMEM)
    out_padded = pl.pallas_call(
        _fused_gcn_kernel,
        out_shape=jax.ShapeDtypeStruct((n, _LANE), jnp.float32),
        in_specs=[vmem_spec] * 6,
        out_specs=vmem_spec,
        scratch_shapes=[pltpu.VMEM((n, _LANE), jnp.float32)],
        cost_estimate=pl.CostEstimate(flops=flops, transcendentals=0,
                                      bytes_accessed=bytes_accessed),
    )(a_bf, h_p, w1_p, b1_p, w2_p, b2_p)

    return out_padded[:, :f_out]


def build_normalized_adjacency(key, n):
    """Dense A_hat = D^{-1/2} (A + I) D^{-1/2} from a random undirected graph."""
    a = (jax.random.uniform(key, (n, n)) < 0.15).astype(jnp.float32)
    a = jnp.maximum(a, a.T)                       # symmetrize
    a = a * (1.0 - jnp.eye(n)) + jnp.eye(n)       # add self loops
    deg = jnp.sum(a, axis=1)
    d_inv_sqrt = 1.0 / jnp.sqrt(deg)
    return a * d_inv_sqrt[:, None] * d_inv_sqrt[None, :]


if __name__ == "__main__":
    key = jax.random.PRNGKey(0)
    k_adj, k_h, k_w1, k_w2 = jax.random.split(key, 4)

    N = 64        # number of graph nodes
    F_IN = 32     # input feature dim
    F_HID = 32    # hidden dim
    F_OUT = 16    # output dim

    a_hat = build_normalized_adjacency(k_adj, N)
    h = jax.random.normal(k_h, (N, F_IN), dtype=jnp.float32)

    params = {
        "w1": jax.random.normal(k_w1, (F_IN, F_HID), dtype=jnp.float32) * 0.1,
        "b1": jnp.zeros((1, F_HID), dtype=jnp.float32),
        "w2": jax.random.normal(k_w2, (F_HID, F_OUT), dtype=jnp.float32) * 0.1,
        "b2": jnp.zeros((1, F_OUT), dtype=jnp.float32),
    }

    out = jax.block_until_ready(model_forward(a_hat, h, params))
    assert out.shape == (N, F_OUT)

    # Reference 1: same bf16-operand / f32-accumulation path as the kernel.
    def bf(x):
        return x.astype(jnp.bfloat16)
    xw1 = jnp.dot(bf(h), bf(params["w1"]), preferred_element_type=jnp.float32)
    agg1 = jnp.dot(bf(a_hat), bf(xw1), preferred_element_type=jnp.float32)
    hid = jnp.maximum(agg1 + params["b1"], 0.0)
    xw2 = jnp.dot(bf(hid), bf(params["w2"]), preferred_element_type=jnp.float32)
    agg2 = jnp.dot(bf(a_hat), bf(xw2), preferred_element_type=jnp.float32)
    ref_bf16_path = agg2 + params["b2"]
    assert jnp.allclose(out, ref_bf16_path, atol=2e-3, rtol=2e-3), float(
        jnp.max(jnp.abs(out - ref_bf16_path)))

    # Reference 2: pure-f32 GCN stack (loose tolerance, bf16 MXU operands).
    ref = jnp.maximum(a_hat @ (h @ params["w1"]) + params["b1"], 0.0)
    ref = a_hat @ (ref @ params["w2"]) + params["b2"]
    assert jnp.allclose(out, ref, atol=5e-2, rtol=5e-2), float(
        jnp.max(jnp.abs(out - ref)))

    print("KERNEL_OK")
</pallas_src>

<mosaic_0001>
module attributes {stable_mosaic.version = 11 : i64} {
  func.func @_fused_gcn_kernel(%arg0: memref<64x64xbf16, #tpu.memory_space<vmem>>, %arg1: memref<64x128xbf16, #tpu.memory_space<vmem>>, %arg2: memref<128x128xbf16, #tpu.memory_space<vmem>>, %arg3: memref<1x128xf32, #tpu.memory_space<vmem>>, %arg4: memref<128x128xbf16, #tpu.memory_space<vmem>>, %arg5: memref<1x128xf32, #tpu.memory_space<vmem>>, %arg6: memref<64x128xf32, #tpu.memory_space<vmem>>, %arg7: memref<64x128xf32, #tpu.memory_space<vmem>>) attributes {dimension_semantics = [], scalar_prefetch = 0 : i64, scratch_operands = 1 : i64, tpu.core_type = #tpu.core_type<tc>} {
    %c0 = arith.constant 0 : index
    %c0_0 = arith.constant 0 : index
    %0 = vector.load %arg1[%c0, %c0_0] : memref<64x128xbf16, #tpu.memory_space<vmem>>, vector<64x128xbf16>
    %c0_1 = arith.constant 0 : index
    %c0_2 = arith.constant 0 : index
    %1 = vector.load %arg2[%c0_1, %c0_2] : memref<128x128xbf16, #tpu.memory_space<vmem>>, vector<128x128xbf16>
    %cst = arith.constant dense<0.000000e+00> : vector<64x128xf32>
    %2 = tpu.matmul %0, %1, %cst {dimension_numbers = #tpu.dot_dimension_numbers<[1], [0], [0], [1], [0, 0, 1, 1], [], []>} : vector<64x128xbf16>, vector<128x128xbf16>, vector<64x128xf32> -> vector<64x128xf32>
    %c0_3 = arith.constant 0 : index
    %c0_4 = arith.constant 0 : index
    %3 = vector.load %arg0[%c0_3, %c0_4] : memref<64x64xbf16, #tpu.memory_space<vmem>>, vector<64x64xbf16>
    %4 = arith.truncf %2 : vector<64x128xf32> to vector<64x128xbf16>
    %cst_5 = arith.constant dense<0.000000e+00> : vector<64x128xf32>
    %5 = tpu.matmul %3, %4, %cst_5 {dimension_numbers = #tpu.dot_dimension_numbers<[1], [0], [0], [1], [0, 0, 1, 1], [], []>} : vector<64x64xbf16>, vector<64x128xbf16>, vector<64x128xf32> -> vector<64x128xf32>
    %c0_6 = arith.constant 0 : index
    %c0_7 = arith.constant 0 : index
    %6 = vector.load %arg3[%c0_6, %c0_7] : memref<1x128xf32, #tpu.memory_space<vmem>>, vector<1x128xf32>
    %7 = vector.broadcast %6 : vector<1x128xf32> to vector<64x128xf32>
    %8 = arith.addf %5, %7 : vector<64x128xf32>
    %cst_8 = arith.constant 0.000000e+00 : f32
    %9 = vector.broadcast %cst_8 : f32 to vector<64x128xf32>
    %10 = arith.maximumf %8, %9 : vector<64x128xf32>
    %c0_9 = arith.constant 0 : index
    %c0_10 = arith.constant 0 : index
    %11 = vector.load %arg7[%c0_9, %c0_10] : memref<64x128xf32, #tpu.memory_space<vmem>>, vector<64x128xf32>
    tpu.vector_store %arg7[%c0_9, %c0_10], %10 {strides = array<i32>} : memref<64x128xf32, #tpu.memory_space<vmem>>, vector<64x128xf32>,
    %c0_11 = arith.constant 0 : index
    %c0_12 = arith.constant 0 : index
    %12 = vector.load %arg7[%c0_11, %c0_12] : memref<64x128xf32, #tpu.memory_space<vmem>>, vector<64x128xf32>
    %13 = arith.truncf %12 : vector<64x128xf32> to vector<64x128xbf16>
    %c0_13 = arith.constant 0 : index
    %c0_14 = arith.constant 0 : index
    %14 = vector.load %arg4[%c0_13, %c0_14] : memref<128x128xbf16, #tpu.memory_space<vmem>>, vector<128x128xbf16>
    %cst_15 = arith.constant dense<0.000000e+00> : vector<64x128xf32>
    %15 = tpu.matmul %13, %14, %cst_15 {dimension_numbers = #tpu.dot_dimension_numbers<[1], [0], [0], [1], [0, 0, 1, 1], [], []>} : vector<64x128xbf16>, vector<128x128xbf16>, vector<64x128xf32> -> vector<64x128xf32>
    %c0_16 = arith.constant 0 : index
    %c0_17 = arith.constant 0 : index
    %16 = vector.load %arg0[%c0_16, %c0_17] : memref<64x64xbf16, #tpu.memory_space<vmem>>, vector<64x64xbf16>
    %17 = arith.truncf %15 : vector<64x128xf32> to vector<64x128xbf16>
    %cst_18 = arith.constant dense<0.000000e+00> : vector<64x128xf32>
    %18 = tpu.matmul %16, %17, %cst_18 {dimension_numbers = #tpu.dot_dimension_numbers<[1], [0], [0], [1], [0, 0, 1, 1], [], []>} : vector<64x64xbf16>, vector<64x128xbf16>, vector<64x128xf32> -> vector<64x128xf32>
    %c0_19 = arith.constant 0 : index
    %c0_20 = arith.constant 0 : index
    %19 = vector.load %arg5[%c0_19, %c0_20] : memref<1x128xf32, #tpu.memory_space<vmem>>, vector<1x128xf32>
    %20 = vector.broadcast %19 : vector<1x128xf32> to vector<64x128xf32>
    %21 = arith.addf %18, %20 : vector<64x128xf32>
    %c0_21 = arith.constant 0 : index
    %c0_22 = arith.constant 0 : index
    %22 = vector.load %arg6[%c0_21, %c0_22] : memref<64x128xf32, #tpu.memory_space<vmem>>, vector<64x128xf32>
    tpu.vector_store %arg6[%c0_21, %c0_22], %21 {strides = array<i32>} : memref<64x128xf32, #tpu.memory_space<vmem>>, vector<64x128xf32>,
    return
  }
}

</mosaic_0001>

<llo_original>
// kernel: model_forward.1
$region0: #{model_forward.1}
  #allocation0 [shape = 'u32[]', space=smem, size = 0x4, offset = 0x4, fixed_abs, tag = 'smem constant byte address 0x4 - core index']
  #allocation1 [shape = 'u32[144,128]{1,0:T(1,128)}', space=vmem, size = 0x12000, scoped, tag = 'internal scratch']
  #allocation2 [shape = 'f32[64,128]{1,0:T(8,128)}', space=vmem, size = 0x8000, scoped, tag = 'scratch operand']
  %s0 = inlined_call_operand.vmem [shape: bf16[64,64], index: 0, kind: input, shape index: {}]
  %s1 = inlined_call_operand.vmem [shape: bf16[64,128], index: 1, kind: input, shape index: {}]
  %s2 = inlined_call_operand.vmem [shape: bf16[128,128], index: 2, kind: input, shape index: {}]
  %s3 = inlined_call_operand.vmem [shape: f32[1,128], index: 3, kind: input, shape index: {}]
  %s4 = inlined_call_operand.vmem [shape: bf16[128,128], index: 4, kind: input, shape index: {}]
  %s5 = inlined_call_operand.vmem [shape: f32[1,128], index: 5, kind: input, shape index: {}]
  %s6 = inlined_call_operand.vmem [shape: f32[64,128], index: 6, kind: output, shape index: {}]
  %s7 = sld [smem:[#allocation0]]
  $region34: #{model_forward.1} parent=0
    _
  %s9 = ssub.s32 1, %s7
  %s10 = scalar_select 0, %s9, %s7
  // Predicated region
  $region2: #{model_forward.1} parent=0 // pred_check
    _
  $region3: #{model_forward.1} parent=0 // pred_check_branch
    %12 = sbr.rel (0) target = $region5
  $region4: #{model_forward.1} parent=0 // pred_region
    _
  $region5: #{model_forward.1} parent=0 // pred_fallthru
    _
  // Predicated region
  $region6: #{model_forward.1} parent=0 // pred_check
    _
  $region7: #{model_forward.1} parent=0 // pred_check_branch
    %14 = sbr.rel (0) target = $region9
  $region8: #{model_forward.1} parent=0 // pred_region
    _
  $region9: #{model_forward.1} parent=0 // pred_fallthru
    _
  // Predicated region
  $region10: #{model_forward.1} parent=0 // pred_check
    _
  $region11: #{model_forward.1} parent=0 // pred_check_branch
    %16 = sbr.rel (0) target = $region13
  $region12: #{model_forward.1} parent=0 // pred_region
    _
  $region13: #{model_forward.1} parent=0 // pred_fallthru
    _
  // Predicated region
  $region14: #{model_forward.1} parent=0 // pred_check
    _
  $region15: #{model_forward.1} parent=0 // pred_check_branch
    %18 = sbr.rel (0) target = $region17
  $region16: #{model_forward.1} parent=0 // pred_region
    _
  $region17: #{model_forward.1} parent=0 // pred_fallthru
    _
  // Predicated region
  $region18: #{model_forward.1} parent=0 // pred_check
    _
  $region19: #{model_forward.1} parent=0 // pred_check_branch
    %20 = sbr.rel (0) target = $region21
  $region20: #{model_forward.1} parent=0 // pred_region
    _
  $region21: #{model_forward.1} parent=0 // pred_fallthru
    _
  // Predicated region
  $region22: #{model_forward.1} parent=0 // pred_check
    _
  $region23: #{model_forward.1} parent=0 // pred_check_branch
    %22 = sbr.rel (0) target = $region25
  $region24: #{model_forward.1} parent=0 // pred_region
    _
  $region25: #{model_forward.1} parent=0 // pred_fallthru
    _
  %v24 = vld [vmem:[%s1] sm:$0xf]
  %v25 = vld [vmem:[%s1 + $0x4] sm:$0xf]
  %v26 = vld [vmem:[%s1 + $0x8] sm:$0xf]
  %v27 = vld [vmem:[%s1 + $0xc] sm:$0xf]
  %v28 = vld [vmem:[%s1 + $0x10] sm:$0xf]
  %v29 = vld [vmem:[%s1 + $0x14] sm:$0xf]
  %v30 = vld [vmem:[%s1 + $0x18] sm:$0xf]
  %v31 = vld [vmem:[%s1 + $0x1c] sm:$0xf]
  %v32 = vld [vmem:[%s2] sm:$0xf]
  %v33 = vld [vmem:[%s2 + $0x4] sm:$0xf]
  %v34 = vld [vmem:[%s2 + $0x8] sm:$0xf]
  %v35 = vld [vmem:[%s2 + $0xc] sm:$0xf]
  %v36 = vld [vmem:[%s2 + $0x10] sm:$0xf]
  %v37 = vld [vmem:[%s2 + $0x14] sm:$0xf]
  %v38 = vld [vmem:[%s2 + $0x18] sm:$0xf]
  %v39 = vld [vmem:[%s2 + $0x1c] sm:$0xf]
  %v40 = vld [vmem:[%s2 + $0x20] sm:$0xf]
  %v41 = vld [vmem:[%s2 + $0x24] sm:$0xf]
  %v42 = vld [vmem:[%s2 + $0x28] sm:$0xf]
  %v43 = vld [vmem:[%s2 + $0x2c] sm:$0xf]
  %v44 = vld [vmem:[%s2 + $0x30] sm:$0xf]
  %v45 = vld [vmem:[%s2 + $0x34] sm:$0xf]
  %v46 = vld [vmem:[%s2 + $0x38] sm:$0xf]
  %v47 = vld [vmem:[%s2 + $0x3c] sm:$0xf]
  %v56 = vunpack.c.l.b16 %v24
  %v57 = vunpack.c.l.b16 %v25
  %v58 = vunpack.c.l.b16 %v26
  %v59 = vunpack.c.l.b16 %v27
  %v60 = vunpack.c.l.b16 %v28
  %v61 = vunpack.c.l.b16 %v29
  %v62 = vunpack.c.l.b16 %v30
  %v63 = vunpack.c.l.b16 %v31
  %v64 = vpack.c.b16 %v57, %v56
  %v65 = vpack.c.b16 %v59, %v58
  %v66 = vpack.c.b16 %v61, %v60
  %v67 = vpack.c.b16 %v63, %v62
  %v88 = vunpack.c.l.b16 %v32
  %v89 = vunpack.c.l.b16 %v33
  %v90 = vunpack.c.l.b16 %v34
  %v91 = vunpack.c.l.b16 %v35
  %v92 = vunpack.c.l.b16 %v36
  %v93 = vunpack.c.l.b16 %v37
  %v94 = vunpack.c.l.b16 %v38
  %v95 = vunpack.c.l.b16 %v39
  %v96 = vunpack.c.l.b16 %v40
  %v97 = vunpack.c.l.b16 %v41
  %v98 = vunpack.c.l.b16 %v42
  %v99 = vunpack.c.l.b16 %v43
  %v100 = vunpack.c.l.b16 %v44
  %v101 = vunpack.c.l.b16 %v45
  %v102 = vunpack.c.l.b16 %v46
  %v103 = vunpack.c.l.b16 %v47
  %v104 = vpack.c.b16 %v89, %v88
  %v105 = vpack.c.b16 %v91, %v90
  %v106 = vpack.c.b16 %v93, %v92
  %v107 = vpack.c.b16 %v95, %v94
  %v108 = vpack.c.b16 %v97, %v96
  %v109 = vpack.c.b16 %v99, %v98
  %v110 = vpack.c.b16 %v101, %v100
  %v111 = vpack.c.b16 %v103, %v102
  %120 = vmatprep.subr.bf16.mxu0 0
  %121 = vmatpush1.bf16.msra.mxu0 %v111
  %122 = vmatprep.subr.bf16.mxu0 0
  %123 = vmatpush1.bf16.msra.mxu0 %v110
  %124 = vmatprep.subr.bf16.mxu0 0
  %125 = vmatpush1.bf16.msra.mxu0 %v109
  %126 = vmatprep.subr.bf16.mxu0 0
  %127 = vmatpush1.bf16.msra.mxu0 %v108
  %128 = vmatprep.subr.bf16.mxu0 0
  %129 = vmatpush1.bf16.msra.mxu0 %v107
  %130 = vmatprep.subr.bf16.mxu0 0
  %131 = vmatpush1.bf16.msra.mxu0 %v106
  %132 = vmatprep.subr.bf16.mxu0 0
  %133 = vmatpush1.bf16.msra.mxu0 %v105
  %134 = vmatprep.subr.bf16.mxu0 0
  %135 = vmatpush1.bf16.msra.mxu0 %v104
  %136 = vmatprep.subr.bf16.mxu0 0
  %137 = vmatpush2.bf16.msra.mxu0 0
  %138 = vmatprep.subr.bf16.mxu0 0
  %139 = vmatpush2.bf16.msra.mxu0 0
  %140 = vmatprep.subr.bf16.mxu0 0
  %141 = vmatpush2.bf16.msra.mxu0 0
  %142 = vmatprep.subr.bf16.mxu0 0
  %143 = vmatpush2.bf16.msra.mxu0 0
  %144 = vmatprep.subr.bf16.mxu0 0
  %145 = vmatpush2.bf16.msra.mxu0 0
  %146 = vmatprep.subr.bf16.mxu0 0
  %147 = vmatpush2.bf16.msra.mxu0 0
  %148 = vmatprep.subr.bf16.mxu0 0
  %149 = vmatpush2.bf16.msra.mxu0 0
  %150 = vmatprep.subr.bf16.mxu0 0
  %151 = vmatpush2.bf16.msra.mxu0 0
  %152 = vmatprep.mubr.bf16.mxu0 0
  %153 = vmatmul.mubr.bf16.gmra.mxu0 %v64
  %v154 = vpop.f32.mrf.mxu0
  %v155 = vadd.f32 0.0, %v154
  %v156 = vpop.f32.mrf.mxu0
  %v157 = vpop.f32.mrf.mxu0
  %v158 = vadd.f32 0.0, %v157
  %v159 = vpop.f32.mrf.mxu0
  %160 = vmatprep.mubr.bf16.mxu0 0
  %161 = vmatmul.mubr.bf16.gmra.mxu0 %v65
  %v162 = vpop.f32.mrf.mxu0
  %v163 = vadd.f32 0.0, %v162
  %v164 = vpop.f32.mrf.mxu0
  %v165 = vpop.f32.mrf.mxu0
  %v166 = vadd.f32 0.0, %v165
  %v167 = vpop.f32.mrf.mxu0
  %168 = vmatprep.mubr.bf16.mxu0 0
  %169 = vmatmul.mubr.bf16.gmra.mxu0 %v66
  %v170 = vpop.f32.mrf.mxu0
  %v171 = vadd.f32 0.0, %v170
  %v172 = vpop.f32.mrf.mxu0
  %v173 = vpop.f32.mrf.mxu0
  %v174 = vadd.f32 0.0, %v173
  %v175 = vpop.f32.mrf.mxu0
  %176 = vmatprep.mubr.bf16.mxu0 0
  %177 = vmatmul.mubr.bf16.gmra.mxu0 %v67
  %v178 = vpop.f32.mrf.mxu0
  %v179 = vadd.f32 0.0, %v178
  %v180 = vpop.f32.mrf.mxu0
  %v181 = vpop.f32.mrf.mxu0
  %v182 = vadd.f32 0.0, %v181
  %v183 = vpop.f32.mrf.mxu0
  %184 = vdwg.mxu0
  %v185 = vld [vmem:[%s0] sm:$0xf]
  %v186 = vld [vmem:[%s0 + $0x4] sm:$0xf]
  %v187 = vld [vmem:[%s0 + $0x8] sm:$0xf]
  %v188 = vld [vmem:[%s0 + $0xc] sm:$0xf]
  %v189 = vld [vmem:[%s0 + $0x10] sm:$0xf]
  %v190 = vld [vmem:[%s0 + $0x14] sm:$0xf]
  %v191 = vld [vmem:[%s0 + $0x18] sm:$0xf]
  %v192 = vld [vmem:[%s0 + $0x1c] sm:$0xf]
  %v193 = vpack.c.bf16 %v158, %v155
  %v194 = vpack.c.bf16 %v166, %v163
  %v195 = vpack.c.bf16 %v174, %v171
  %v196 = vpack.c.bf16 %v182, %v179
  %v197 = vld [vmem:[%s3] sm:$0x1]
  %v199 = vlaneseq
  %v200 = vshrl.u32 %v199, 7
  %v201 = vsub.s32 0, %v200
  %v202 = vrot.slane %v197, %v201
  %v212 = vunpack.c.l.b16 %v185
  %v213 = vunpack.c.l.b16 %v186
  %v214 = vunpack.c.l.b16 %v187
  %v215 = vunpack.c.l.b16 %v188
  %v216 = vunpack.c.l.b16 %v189
  %v217 = vunpack.c.l.b16 %v190
  %v218 = vunpack.c.l.b16 %v191
  %v219 = vunpack.c.l.b16 %v192
  %v220 = vpack.c.b16 %v213, %v212
  %v221 = vpack.c.b16 %v215, %v214
  %v222 = vpack.c.b16 %v217, %v216
  %v223 = vpack.c.b16 %v219, %v218
  %vm224 = vcmask 523264
  %v226 = vsel %vm224, %v220, 0
  %v229 = vsel %vm224, %v221, 0
  %v232 = vsel %vm224, %v222, 0
  %v235 = vsel %vm224, %v223, 0
  %237 = vmatprep.subr.bf16.mxu0 0
  %238 = vmatpush1.bf16.msra.mxu0 0
  %239 = vmatprep.subr.bf16.mxu0 0
  %240 = vmatpush1.bf16.msra.mxu0 0
  %241 = vmatprep.subr.bf16.mxu0 0
  %242 = vmatpush1.bf16.msra.mxu0 0
  %243 = vmatprep.subr.bf16.mxu0 0
  %244 = vmatpush1.bf16.msra.mxu0 0
  %245 = vmatprep.subr.bf16.mxu0 0
  %246 = vmatpush1.bf16.msra.mxu0 %v196
  %247 = vmatprep.subr.bf16.mxu0 0
  %248 = vmatpush1.bf16.msra.mxu0 %v195
  %249 = vmatprep.subr.bf16.mxu0 0
  %250 = vmatpush1.bf16.msra.mxu0 %v194
  %251 = vmatprep.subr.bf16.mxu0 0
  %252 = vmatpush1.bf16.msra.mxu0 %v193
  %253 = vmatprep.subr.bf16.mxu0 0
  %254 = vmatpush2.bf16.msra.mxu0 0
  %255 = vmatprep.subr.bf16.mxu0 0
  %256 = vmatpush2.bf16.msra.mxu0 0
  %257 = vmatprep.subr.bf16.mxu0 0
  %258 = vmatpush2.bf16.msra.mxu0 0
  %259 = vmatprep.subr.bf16.mxu0 0
  %260 = vmatpush2.bf16.msra.mxu0 0
  %261 = vmatprep.subr.bf16.mxu0 0
  %262 = vmatpush2.bf16.msra.mxu0 0
  %263 = vmatprep.subr.bf16.mxu0 0
  %264 = vmatpush2.bf16.msra.mxu0 0
  %265 = vmatprep.subr.bf16.mxu0 0
  %266 = vmatpush2.bf16.msra.mxu0 0
  %267 = vmatprep.subr.bf16.mxu0 0
  %268 = vmatpush2.bf16.msra.mxu0 0
  %269 = vmatprep.mubr.bf16.mxu0 0
  %270 = vmatmul.mubr.bf16.gmra.mxu0 %v226
  %v271 = vpop.f32.mrf.mxu0
  %v272 = vadd.f32 %v202, %v271
  %v273 = vpop.f32.mrf.mxu0
  %v274 = vpop.f32.mrf.mxu0
  %v275 = vadd.f32 %v202, %v274
  %v276 = vpop.f32.mrf.mxu0
  %277 = vmatprep.mubr.bf16.mxu0 0
  %278 = vmatmul.mubr.bf16.gmra.mxu0 %v229
  %v279 = vpop.f32.mrf.mxu0
  %v280 = vadd.f32 %v202, %v279
  %v281 = vpop.f32.mrf.mxu0
  %v282 = vpop.f32.mrf.mxu0
  %v283 = vadd.f32 %v202, %v282
  %v284 = vpop.f32.mrf.mxu0
  %285 = vmatprep.mubr.bf16.mxu0 0
  %286 = vmatmul.mubr.bf16.gmra.mxu0 %v232
  %v287 = vpop.f32.mrf.mxu0
  %v288 = vadd.f32 %v202, %v287
  %v289 = vpop.f32.mrf.mxu0
  %v290 = vpop.f32.mrf.mxu0
  %v291 = vadd.f32 %v202, %v290
  %v292 = vpop.f32.mrf.mxu0
  %293 = vmatprep.mubr.bf16.mxu0 0
  %294 = vmatmul.mubr.bf16.gmra.mxu0 %v235
  %v295 = vpop.f32.mrf.mxu0
  %v296 = vadd.f32 %v202, %v295
  %v297 = vpop.f32.mrf.mxu0
  %v298 = vpop.f32.mrf.mxu0
  %v299 = vadd.f32 %v202, %v298
  %v300 = vpop.f32.mrf.mxu0
  %301 = vdwg.mxu0
  %v302 = vmax.f32 %v272, 0.0
  %v303 = vmax.f32 %v275, 0.0
  %v304 = vmax.f32 %v280, 0.0
  %v305 = vmax.f32 %v283, 0.0
  %v306 = vmax.f32 %v288, 0.0
  %v307 = vmax.f32 %v291, 0.0
  %v308 = vmax.f32 %v296, 0.0
  %v309 = vmax.f32 %v299, 0.0
  %310 = vst [vmem:[#allocation2] sm:$0xff] %v302
  %311 = vst [vmem:[#allocation2 + $0x8] sm:$0xff] %v303
  %312 = vst [vmem:[#allocation2 + $0x10] sm:$0xff] %v304
  %313 = vst [vmem:[#allocation2 + $0x18] sm:$0xff] %v305
  %314 = vst [vmem:[#allocation2 + $0x20] sm:$0xff] %v306
  %315 = vst [vmem:[#allocation2 + $0x28] sm:$0xff] %v307
  %316 = vst [vmem:[#allocation2 + $0x30] sm:$0xff] %v308
  %317 = vst [vmem:[#allocation2 + $0x38] sm:$0xff] %v309
  %v318 = vld [vmem:[#allocation2] sm:$0xff]
  %v319 = vld [vmem:[#allocation2 + $0x8] sm:$0xff]
  %v320 = vld [vmem:[#allocation2 + $0x10] sm:$0xff]
  %v321 = vld [vmem:[#allocation2 + $0x18] sm:$0xff]
  %v322 = vld [vmem:[#allocation2 + $0x20] sm:$0xff]
  %v323 = vld [vmem:[#allocation2 + $0x28] sm:$0xff]
  %v324 = vld [vmem:[#allocation2 + $0x30] sm:$0xff]
  %v325 = vld [vmem:[#allocation2 + $0x38] sm:$0xff]
  %v326 = vpack.c.bf16 %v319, %v318
  %v327 = vpack.c.bf16 %v321, %v320
  %v328 = vpack.c.bf16 %v323, %v322
  %v329 = vpack.c.bf16 %v325, %v324
  %v330 = vld [vmem:[%s4] sm:$0xf]
  %v331 = vld [vmem:[%s4 + $0x4] sm:$0xf]
  %v332 = vld [vmem:[%s4 + $0x8] sm:$0xf]
  %v333 = vld [vmem:[%s4 + $0xc] sm:$0xf]
  %v334 = vld [vmem:[%s4 + $0x10] sm:$0xf]
  %v335 = vld [vmem:[%s4 + $0x14] sm:$0xf]
  %v336 = vld [vmem:[%s4 + $0x18] sm:$0xf]
  %v337 = vld [vmem:[%s4 + $0x1c] sm:$0xf]
  %v338 = vld [vmem:[%s4 + $0x20] sm:$0xf]
  %v339 = vld [vmem:[%s4 + $0x24] sm:$0xf]
  %v340 = vld [vmem:[%s4 + $0x28] sm:$0xf]
  %v341 = vld [vmem:[%s4 + $0x2c] sm:$0xf]
  %v342 = vld [vmem:[%s4 + $0x30] sm:$0xf]
  %v343 = vld [vmem:[%s4 + $0x34] sm:$0xf]
  %v344 = vld [vmem:[%s4 + $0x38] sm:$0xf]
  %v345 = vld [vmem:[%s4 + $0x3c] sm:$0xf]
  %v362 = vunpack.c.l.b16 %v330
  %v363 = vunpack.c.l.b16 %v331
  %v364 = vunpack.c.l.b16 %v332
  %v365 = vunpack.c.l.b16 %v333
  %v366 = vunpack.c.l.b16 %v334
  %v367 = vunpack.c.l.b16 %v335
  %v368 = vunpack.c.l.b16 %v336
  %v369 = vunpack.c.l.b16 %v337
  %v370 = vunpack.c.l.b16 %v338
  %v371 = vunpack.c.l.b16 %v339
  %v372 = vunpack.c.l.b16 %v340
  %v373 = vunpack.c.l.b16 %v341
  %v374 = vunpack.c.l.b16 %v342
  %v375 = vunpack.c.l.b16 %v343
  %v376 = vunpack.c.l.b16 %v344
  %v377 = vunpack.c.l.b16 %v345
  %v378 = vpack.c.b16 %v363, %v362
  %v379 = vpack.c.b16 %v365, %v364
  %v380 = vpack.c.b16 %v367, %v366
  %v381 = vpack.c.b16 %v369, %v368
  %v382 = vpack.c.b16 %v371, %v370
  %v383 = vpack.c.b16 %v373, %v372
  %v384 = vpack.c.b16 %v375, %v374
  %v385 = vpack.c.b16 %v377, %v376
  %394 = vmatprep.subr.bf16.mxu0 0
  %395 = vmatpush1.bf16.msra.mxu0 %v385
  %396 = vmatprep.subr.bf16.mxu0 0
  %397 = vmatpush1.bf16.msra.mxu0 %v384
  %398 = vmatprep.subr.bf16.mxu0 0
  %399 = vmatpush1.bf16.msra.mxu0 %v383
  %400 = vmatprep.subr.bf16.mxu0 0
  %401 = vmatpush1.bf16.msra.mxu0 %v382
  %402 = vmatprep.subr.bf16.mxu0 0
  %403 = vmatpush1.bf16.msra.mxu0 %v381
  %404 = vmatprep.subr.bf16.mxu0 0
  %405 = vmatpush1.bf16.msra.mxu0 %v380
  %406 = vmatprep.subr.bf16.mxu0 0
  %407 = vmatpush1.bf16.msra.mxu0 %v379
  %408 = vmatprep.subr.bf16.mxu0 0
  %409 = vmatpush1.bf16.msra.mxu0 %v378
  %410 = vmatprep.subr.bf16.mxu0 0
  %411 = vmatpush2.bf16.msra.mxu0 0
  %412 = vmatprep.subr.bf16.mxu0 0
  %413 = vmatpush2.bf16.msra.mxu0 0
  %414 = vmatprep.subr.bf16.mxu0 0
  %415 = vmatpush2.bf16.msra.mxu0 0
  %416 = vmatprep.subr.bf16.mxu0 0
  %417 = vmatpush2.bf16.msra.mxu0 0
  %418 = vmatprep.subr.bf16.mxu0 0
  %419 = vmatpush2.bf16.msra.mxu0 0
  %420 = vmatprep.subr.bf16.mxu0 0
  %421 = vmatpush2.bf16.msra.mxu0 0
  %422 = vmatprep.subr.bf16.mxu0 0
  %423 = vmatpush2.bf16.msra.mxu0 0
  %424 = vmatprep.subr.bf16.mxu0 0
  %425 = vmatpush2.bf16.msra.mxu0 0
  %426 = vmatprep.mubr.bf16.mxu0 0
  %427 = vmatmul.mubr.bf16.gmra.mxu0 %v326
  %v428 = vpop.f32.mrf.mxu0
  %v429 = vadd.f32 0.0, %v428
  %v430 = vpop.f32.mrf.mxu0
  %v431 = vpop.f32.mrf.mxu0
  %v432 = vadd.f32 0.0, %v431
  %v433 = vpop.f32.mrf.mxu0
  %434 = vmatprep.mubr.bf16.mxu0 0
  %435 = vmatmul.mubr.bf16.gmra.mxu0 %v327
  %v436 = vpop.f32.mrf.mxu0
  %v437 = vadd.f32 0.0, %v436
  %v438 = vpop.f32.mrf.mxu0
  %v439 = vpop.f32.mrf.mxu0
  %v440 = vadd.f32 0.0, %v439
  %v441 = vpop.f32.mrf.mxu0
  %442 = vmatprep.mubr.bf16.mxu0 0
  %443 = vmatmul.mubr.bf16.gmra.mxu0 %v328
  %v444 = vpop.f32.mrf.mxu0
  %v445 = vadd.f32 0.0, %v444
  %v446 = vpop.f32.mrf.mxu0
  %v447 = vpop.f32.mrf.mxu0
  %v448 = vadd.f32 0.0, %v447
  %v449 = vpop.f32.mrf.mxu0
  %450 = vmatprep.mubr.bf16.mxu0 0
  %451 = vmatmul.mubr.bf16.gmra.mxu0 %v329
  %v452 = vpop.f32.mrf.mxu0
  %v453 = vadd.f32 0.0, %v452
  %v454 = vpop.f32.mrf.mxu0
  %v455 = vpop.f32.mrf.mxu0
  %v456 = vadd.f32 0.0, %v455
  %v457 = vpop.f32.mrf.mxu0
  %458 = vdwg.mxu0
  %v459 = vld [vmem:[%s0] sm:$0xf]
  %v460 = vld [vmem:[%s0 + $0x4] sm:$0xf]
  %v461 = vld [vmem:[%s0 + $0x8] sm:$0xf]
  %v462 = vld [vmem:[%s0 + $0xc] sm:$0xf]
  %v463 = vld [vmem:[%s0 + $0x10] sm:$0xf]
  %v464 = vld [vmem:[%s0 + $0x14] sm:$0xf]
  %v465 = vld [vmem:[%s0 + $0x18] sm:$0xf]
  %v466 = vld [vmem:[%s0 + $0x1c] sm:$0xf]
  %v467 = vpack.c.bf16 %v432, %v429
  %v468 = vpack.c.bf16 %v440, %v437
  %v469 = vpack.c.bf16 %v448, %v445
  %v470 = vpack.c.bf16 %v456, %v453
  %v471 = vld [vmem:[%s5] sm:$0x1]
  %v473 = vlaneseq
  %v474 = vshrl.u32 %v473, 7
  %v475 = vsub.s32 0, %v474
  %v476 = vrot.slane %v471, %v475
  %v486 = vunpack.c.l.b16 %v459
  %v487 = vunpack.c.l.b16 %v460
  %v488 = vunpack.c.l.b16 %v461
  %v489 = vunpack.c.l.b16 %v462
  %v490 = vunpack.c.l.b16 %v463
  %v491 = vunpack.c.l.b16 %v464
  %v492 = vunpack.c.l.b16 %v465
  %v493 = vunpack.c.l.b16 %v466
  %v494 = vpack.c.b16 %v487, %v486
  %v495 = vpack.c.b16 %v489, %v488
  %v496 = vpack.c.b16 %v491, %v490
  %v497 = vpack.c.b16 %v493, %v492
  %v499 = vsel %vm224, %v494, 0
  %v502 = vsel %vm224, %v495, 0
  %v505 = vsel %vm224, %v496, 0
  %v508 = vsel %vm224, %v497, 0
  %510 = vmatprep.subr.bf16.mxu0 0
  %511 = vmatpush1.bf16.msra.mxu0 0
  %512 = vmatprep.subr.bf16.mxu0 0
  %513 = vmatpush1.bf16.msra.mxu0 0
  %514 = vmatprep.subr.bf16.mxu0 0
  %515 = vmatpush1.bf16.msra.mxu0 0
  %516 = vmatprep.subr.bf16.mxu0 0
  %517 = vmatpush1.bf16.msra.mxu0 0
  %518 = vmatprep.subr.bf16.mxu0 0
  %519 = vmatpush1.bf16.msra.mxu0 %v470
  %520 = vmatprep.subr.bf16.mxu0 0
  %521 = vmatpush1.bf16.msra.mxu0 %v469
  %522 = vmatprep.subr.bf16.mxu0 0
  %523 = vmatpush1.bf16.msra.mxu0 %v468
  %524 = vmatprep.subr.bf16.mxu0 0
  %525 = vmatpush1.bf16.msra.mxu0 %v467
  %526 = vmatprep.subr.bf16.mxu0 0
  %527 = vmatpush2.bf16.msra.mxu0 0
  %528 = vmatprep.subr.bf16.mxu0 0
  %529 = vmatpush2.bf16.msra.mxu0 0
  %530 = vmatprep.subr.bf16.mxu0 0
  %531 = vmatpush2.bf16.msra.mxu0 0
  %532 = vmatprep.subr.bf16.mxu0 0
  %533 = vmatpush2.bf16.msra.mxu0 0
  %534 = vmatprep.subr.bf16.mxu0 0
  %535 = vmatpush2.bf16.msra.mxu0 0
  %536 = vmatprep.subr.bf16.mxu0 0
  %537 = vmatpush2.bf16.msra.mxu0 0
  %538 = vmatprep.subr.bf16.mxu0 0
  %539 = vmatpush2.bf16.msra.mxu0 0
  %540 = vmatprep.subr.bf16.mxu0 0
  %541 = vmatpush2.bf16.msra.mxu0 0
  %542 = vmatprep.mubr.bf16.mxu0 0
  %543 = vmatmul.mubr.bf16.gmra.mxu0 %v499
  %v544 = vpop.f32.mrf.mxu0
  %v545 = vadd.f32 %v476, %v544
  %v546 = vpop.f32.mrf.mxu0
  %v547 = vpop.f32.mrf.mxu0
  %v548 = vadd.f32 %v476, %v547
  %v549 = vpop.f32.mrf.mxu0
  %550 = vmatprep.mubr.bf16.mxu0 0
  %551 = vmatmul.mubr.bf16.gmra.mxu0 %v502
  %v552 = vpop.f32.mrf.mxu0
  %v553 = vadd.f32 %v476, %v552
  %v554 = vpop.f32.mrf.mxu0
  %v555 = vpop.f32.mrf.mxu0
  %v556 = vadd.f32 %v476, %v555
  %v557 = vpop.f32.mrf.mxu0
  %558 = vmatprep.mubr.bf16.mxu0 0
  %559 = vmatmul.mubr.bf16.gmra.mxu0 %v505
  %v560 = vpop.f32.mrf.mxu0
  %v561 = vadd.f32 %v476, %v560
  %v562 = vpop.f32.mrf.mxu0
  %v563 = vpop.f32.mrf.mxu0
  %v564 = vadd.f32 %v476, %v563
  %v565 = vpop.f32.mrf.mxu0
  %566 = vmatprep.mubr.bf16.mxu0 0
  %567 = vmatmul.mubr.bf16.gmra.mxu0 %v508
  %v568 = vpop.f32.mrf.mxu0
  %v569 = vadd.f32 %v476, %v568
  %v570 = vpop.f32.mrf.mxu0
  %v571 = vpop.f32.mrf.mxu0
  %v572 = vadd.f32 %v476, %v571
  %v573 = vpop.f32.mrf.mxu0
  %574 = vdwg.mxu0
  %575 = vst [vmem:[%s6] sm:$0xff] %v545
  %576 = vst [vmem:[%s6 + $0x8] sm:$0xff] %v548
  %577 = vst [vmem:[%s6 + $0x10] sm:$0xff] %v553
  %578 = vst [vmem:[%s6 + $0x18] sm:$0xff] %v556
  %579 = vst [vmem:[%s6 + $0x20] sm:$0xff] %v561
  %580 = vst [vmem:[%s6 + $0x28] sm:$0xff] %v564
  %581 = vst [vmem:[%s6 + $0x30] sm:$0xff] %v569
  %582 = vst [vmem:[%s6 + $0x38] sm:$0xff] %v572
  // Predicated region
  $region26: #{model_forward.1} parent=0 // pred_check
    _
  $region27: #{model_forward.1} parent=0 // pred_check_branch
    %584 = sbr.rel (0) target = $region29
  $region28: #{model_forward.1} parent=0 // pred_region
    _
  $region29: #{model_forward.1} parent=0 // pred_fallthru
    _
  // Predicated region
  $region30: #{model_forward.1} parent=0 // pred_check
    _
  $region31: #{model_forward.1} parent=0 // pred_check_branch
    %586 = sbr.rel (0) target = $region33
  $region32: #{model_forward.1} parent=0 // pred_region
    _
  $region33: #{model_forward.1} parent=0 // pred_fallthru
    _

</llo_original>
